<compile_context>
chip_gen: v5e
topology: v5e:2x2
jax: 0.10.0
libtpu: 0.0.40
codegen_flags: <defaults>
</compile_context>

<pallas_src>
import functools

import jax
import jax.numpy as jnp
import numpy as np
from jax.experimental import pallas as pl
from jax.experimental.pallas import tpu as pltpu


def _round_up(a, b):
    return (a + b - 1) // b * b


def _cdiv(a, b):
    return (a + b - 1) // b


def _vmem_capacity_bytes():
    try:
        return int(pltpu.get_tpu_info().vmem_capacity_bytes)
    except Exception:
        return 64 * 1024 * 1024  # conservative (v7x-sized) fallback


def _pick_tile(n, candidates):
    for c in candidates:
        if n % c == 0:
            return c
    return n


# ----------------------------- fused kernels ---------------------------------


def _kernel_identity(x_ref, w0_ref, b0_ref, w1_ref, b1_ref, o_ref, *, compute_dtype):
    # size_in == size_out: identity shortcut, residual add kept in f32.
    x = x_ref[...]                                                  # (TM, Din) f32
    h0 = jnp.maximum(x, 0.0).astype(compute_dtype)
    net = jnp.dot(h0, w0_ref[...],
                  preferred_element_type=jnp.float32) + b0_ref[...]
    h1 = jnp.maximum(net, 0.0).astype(compute_dtype)
    dx = jnp.dot(h1, w1_ref[...],
                 preferred_element_type=jnp.float32) + b1_ref[...]
    o_ref[...] = (x + dx).astype(o_ref.dtype)


def _kernel_shortcut(x_ref, w0_ref, b0_ref, w1_ref, b1_ref, ws_ref, o_ref, *,
                     compute_dtype):
    # size_in != size_out: fc_1 and the bias-free shortcut are two accumulating
    # dots (no concat temp).  x arrives as bf16 (only feeds matmuls here);
    # relu commutes with the cast so numerics match relu-then-cast.
    x = x_ref[...]                                                  # (TM, Din) bf16
    h0 = jnp.maximum(x, 0).astype(compute_dtype)
    net = jnp.dot(h0, w0_ref[...],
                  preferred_element_type=jnp.float32) + b0_ref[...]
    h1 = jnp.maximum(net, 0.0).astype(compute_dtype)
    out = (jnp.dot(h1, w1_ref[...], preferred_element_type=jnp.float32)
           + jnp.dot(x.astype(compute_dtype), ws_ref[...],
                     preferred_element_type=jnp.float32)
           + b1_ref[...])
    o_ref[...] = out.astype(o_ref.dtype)


# ------------------------ feature-tiled fallback ------------------------------


def _linear_kernel(*refs, relu_input, compute_dtype, has_add):
    # Standard K-tiled matmul: out = (relu?)(x) @ w + b (+ add), f32 accumulate.
    if has_add:
        x_ref, w_ref, b_ref, add_ref, o_ref, acc_ref = refs
    else:
        x_ref, w_ref, b_ref, o_ref, acc_ref = refs
        add_ref = None
    k = pl.program_id(2)

    @pl.when(k == 0)
    def _():
        acc_ref[...] = jnp.zeros_like(acc_ref)

    x = x_ref[...]
    if relu_input:
        x = jnp.maximum(x, 0)
    acc_ref[...] += jnp.dot(x.astype(compute_dtype), w_ref[...],
                            preferred_element_type=jnp.float32)

    @pl.when(k == pl.num_programs(2) - 1)
    def _():
        r = acc_ref[...] + b_ref[...]
        if add_ref is not None:
            r = r + add_ref[...].astype(jnp.float32)
        o_ref[...] = r.astype(o_ref.dtype)


def _tiled_linear(xp, wp, bp, add=None, *, relu_input, compute_dtype):
    m_pad, dp_k = xp.shape
    dp_n = wp.shape[1]
    tm = _pick_tile(m_pad, (512, 256, 128, 64, 32, 16))
    tk = _pick_tile(dp_k, (512, 256, 128))
    tn = _pick_tile(dp_n, (512, 256, 128))
    grid = (m_pad // tm, dp_n // tn, dp_k // tk)

    kernel = functools.partial(_linear_kernel, relu_input=relu_input,
                               compute_dtype=compute_dtype, has_add=add is not None)
    in_specs = [pl.BlockSpec((tm, tk), lambda i, j, k: (i, k)),
                pl.BlockSpec((tk, tn), lambda i, j, k: (k, j)),
                pl.BlockSpec((1, tn), lambda i, j, k: (0, j))]
    args = [xp, wp, bp]
    if add is not None:
        in_specs.append(pl.BlockSpec((tm, tn), lambda i, j, k: (i, j)))
        args.append(add)

    return pl.pallas_call(
        kernel,
        out_shape=jax.ShapeDtypeStruct((m_pad, dp_n), jnp.float32),
        grid=grid,
        in_specs=in_specs,
        out_specs=pl.BlockSpec((tm, tn), lambda i, j, k: (i, j)),
        scratch_shapes=[pltpu.VMEM((tm, tn), jnp.float32)],
        compiler_params=pltpu.CompilerParams(
            dimension_semantics=("parallel", "parallel", "arbitrary")),
    )(*args)


# ----------------------------- parameter prep --------------------------------


def prepare_params(w0, b0, w1, b1, ws=None, *, compute_dtype=jnp.bfloat16):
    """Pad / cast the weights once (hoisted out of the per-call path).

    w0: (size_in, size_h), w1: (size_h, size_out)  (pre-transposed: x @ W + b).
    ws: (size_in, size_out) shortcut weight, or None for the identity shortcut.
    """
    size_in, size_h = w0.shape
    size_out = w1.shape[1]
    dp_in, dp_h, dp_out = (_round_up(size_in, 128), _round_up(size_h, 128),
                           _round_up(size_out, 128))

    def pad2(a, r, c):
        a = a.astype(compute_dtype)
        if a.shape == (r, c):
            return a
        return jnp.zeros((r, c), compute_dtype).at[:a.shape[0], :a.shape[1]].set(a)

    w0p = pad2(w0, dp_in, dp_h)
    w1p = pad2(w1, dp_h, dp_out)
    b0p = jnp.zeros((1, dp_h), jnp.float32).at[0, :size_h].set(b0.astype(jnp.float32))
    b1p = jnp.zeros((1, dp_out), jnp.float32).at[0, :size_out].set(b1.astype(jnp.float32))
    wsp = None if ws is None else pad2(ws, dp_in, dp_out)
    return dict(w0p=w0p, b0p=b0p, w1p=w1p, b1p=b1p, wsp=wsp,
                size_in=size_in, size_h=size_h, size_out=size_out,
                dp_in=dp_in, dp_h=dp_h, dp_out=dp_out,
                compute_dtype=compute_dtype)


# --------------------------------- wrapper ------------------------------------


def resnet_block_fc(x2d, params, *, tm=1024, force_tiled=False):
    """ResnetBlockFC forward.  x2d: (M, size_in).  params: dict from prepare_params()."""
    M, size_in = x2d.shape
    assert size_in == params["size_in"]
    size_h, size_out = params["size_h"], params["size_out"]
    dp_in, dp_h, dp_out = params["dp_in"], params["dp_h"], params["dp_out"]
    cdt = params["compute_dtype"]
    identity = params["wsp"] is None

    weights = [params["w0p"], params["b0p"], params["w1p"], params["b1p"]]
    if not identity:
        weights.append(params["wsp"])
    weight_bytes = sum(int(a.size) * a.dtype.itemsize for a in weights)

    cap = _vmem_capacity_bytes()
    budget = max(cap - (8 << 20), 16 << 20)          # hardware-aware VMEM budget

    # x dtype: bf16 when x only feeds matmuls (shortcut variant); f32 otherwise
    # so the identity residual add stays in f32.
    x_dtype = jnp.float32 if identity else cdt
    x_itemsize = jnp.dtype(x_dtype).itemsize

    def fused_vmem(tm_rows):
        # 2x-buffered x/out tiles + single-buffered weights + in-kernel temporaries
        # (h0 bf16, net f32 + h1 bf16, dx/out f32).
        act = 2 * tm_rows * dp_in * x_itemsize + 2 * tm_rows * dp_out * 4
        temps = tm_rows * dp_in * 2 + tm_rows * dp_h * (4 + 2) + tm_rows * dp_out * 4
        return act + temps + weight_bytes

    use_tiled = force_tiled or fused_vmem(16) > budget

    if not use_tiled:
        # ---- row-tile selection (fused, weights-resident path) ----
        m_pad = _round_up(M, 16)                     # bf16 operands pack 16 sublanes
        if m_pad <= tm:
            if m_pad >= 32:
                tm = _round_up(_cdiv(m_pad, 2), 16)  # >=2 grid steps: v7x dual-TC sharding
            else:
                tm = m_pad
        else:
            cands = sorted({c for c in (tm, 1024, 768, 512, 384, 256, 128) if c <= tm},
                           reverse=True)
            tm = min(cands, key=lambda c: (_round_up(M, c) - M, -c))  # least padded rows
        m_pad = _round_up(m_pad, tm)
        while tm > 16 and fused_vmem(tm) > budget:   # shrink against the VMEM budget
            tm = max(16, _round_up(tm // 2, 16))
            m_pad = _round_up(M, tm)
        if fused_vmem(tm) > budget:
            use_tiled = True

    if use_tiled:
        m_pad = _round_up(M, 16)

    # Pad/cast x only when needed (skip the extra HBM pass for aligned inputs).
    if (m_pad != M) or (dp_in != size_in) or (x2d.dtype != jnp.dtype(x_dtype)):
        xp = jnp.zeros((m_pad, dp_in), x_dtype).at[:M, :size_in].set(
            x2d.astype(x_dtype))
    else:
        xp = x2d

    if use_tiled:
        # Feature-tiled fallback for layers whose weights do not fit VMEM.
        # TODO(synk): a single fused feature-tiled kernel would avoid materializing
        # `net` (and x_s) in HBM; acceptable here since this path is the big-layer escape hatch.
        net = _tiled_linear(xp, params["w0p"], params["b0p"],
                            relu_input=True, compute_dtype=cdt)
        if identity:
            out = _tiled_linear(net, params["w1p"], params["b1p"], add=xp,
                                relu_input=True, compute_dtype=cdt)
        else:
            zb = jnp.zeros((1, dp_out), jnp.float32)
            xs = _tiled_linear(xp, params["wsp"], zb,
                               relu_input=False, compute_dtype=cdt)
            out = _tiled_linear(net, params["w1p"], params["b1p"], add=xs,
                                relu_input=True, compute_dtype=cdt)
    else:
        grid = (m_pad // tm,)
        x_spec = pl.BlockSpec((tm, dp_in), lambda i: (i, 0))
        o_spec = pl.BlockSpec((tm, dp_out), lambda i: (i, 0))

        if identity:
            kernel = functools.partial(_kernel_identity, compute_dtype=cdt)
            args = (xp, params["w0p"], params["b0p"], params["w1p"], params["b1p"])
        else:
            kernel = functools.partial(_kernel_shortcut, compute_dtype=cdt)
            args = (xp, params["w0p"], params["b0p"], params["w1p"], params["b1p"],
                    params["wsp"])

        flops = 2 * M * (size_in * size_h + size_h * size_out)
        if not identity:
            flops += 2 * M * size_in * size_out
        bytes_accessed = M * size_in * x_itemsize + weight_bytes + M * size_out * 4
        cost = pl.CostEstimate(flops=flops, transcendentals=0,
                               bytes_accessed=bytes_accessed)
        vmem_limit = int(min(max(fused_vmem(tm) + (4 << 20), 32 << 20), budget))

        def run(single_buffer_weights):
            def const(shape):
                if single_buffer_weights:
                    # Constant index_map -> one resident copy is enough.
                    return pl.BlockSpec(shape, lambda i: (0, 0),
                                        pipeline_mode=pl.Buffered(1))
                return pl.BlockSpec(shape, lambda i: (0, 0))
            in_specs = [x_spec] + [const(a.shape) for a in args[1:]]
            return pl.pallas_call(
                kernel,
                out_shape=jax.ShapeDtypeStruct((m_pad, dp_out), jnp.float32),
                grid=grid,
                in_specs=in_specs,
                out_specs=o_spec,
                compiler_params=pltpu.CompilerParams(
                    dimension_semantics=("parallel",),
                    vmem_limit_bytes=vmem_limit),
                cost_estimate=cost,
            )(*args)

        try:
            out = run(True)
        except Exception:
            # pipeline_mode=Buffered(1) unsupported on this jax build: fall back to
            # default double-buffered weight specs (identical results).
            out = run(False)

    if m_pad == M and dp_out == size_out:
        return out
    return out[:M, :size_out]


# ----------------------------- init / reference ------------------------------


def init_params(key, size_in, size_out=None, size_h=None, *, zero_fc1=True):
    """Mirror nn.Linear defaults; fc_1.weight zeroed per the PyTorch module.
    Weights stored pre-transposed as (in, out). Returns ws=None for identity shortcut."""
    if size_out is None:
        size_out = size_in
    if size_h is None:
        size_h = min(size_in, size_out)
    k0, k1, k2, k3, k4 = jax.random.split(key, 5)

    bound0 = 1.0 / np.sqrt(size_in)
    w0 = jax.random.uniform(k0, (size_in, size_h), jnp.float32, -bound0, bound0)
    b0 = jax.random.uniform(k1, (size_h,), jnp.float32, -bound0, bound0)

    bound1 = 1.0 / np.sqrt(size_h)
    if zero_fc1:
        w1 = jnp.zeros((size_h, size_out), jnp.float32)
    else:
        w1 = jax.random.uniform(k4, (size_h, size_out), jnp.float32, -bound1, bound1)
    b1 = jax.random.uniform(k2, (size_out,), jnp.float32, -bound1, bound1)

    ws = None if size_in == size_out else jax.random.uniform(
        k3, (size_in, size_out), jnp.float32, -bound0, bound0)
    return w0, b0, w1, b1, ws


def reference(x2d, w0, b0, w1, b1, ws, compute_dtype=jnp.bfloat16):
    """Same math, same operand precision (bf16 matmul operands, f32 accumulate)."""
    h = jnp.maximum(x2d, 0.0).astype(compute_dtype)
    net = jnp.dot(h, w0.astype(compute_dtype),
                  preferred_element_type=jnp.float32) + b0
    h1 = jnp.maximum(net, 0.0).astype(compute_dtype)
    dx = jnp.dot(h1, w1.astype(compute_dtype),
                 preferred_element_type=jnp.float32) + b1
    if ws is None:
        x_s = x2d
    else:
        x_s = jnp.dot(x2d.astype(compute_dtype), ws.astype(compute_dtype),
                      preferred_element_type=jnp.float32)
    return x_s + dx


# ----------------------------- demo / self-test -------------------------------


if __name__ == "__main__":
    key = jax.random.PRNGKey(0)
    kx1, kx2, kp1, kp2 = jax.random.split(key, 4)
    B, N = 2, 8

    # Case 1: size_in != size_out -> linear-shortcut variant (two dots, bf16 x DMA).
    size_in, size_out, size_h = 32, 64, 32
    x = jax.random.normal(kx1, (B, N, size_in), jnp.float32)
    # zero_fc1=False only so the fc_1 matmul path is numerically exercised.
    w0, b0, w1, b1, ws = init_params(kp1, size_in, size_out, size_h, zero_fc1=False)
    params = prepare_params(w0, b0, w1, b1, ws)
    x2d = x.reshape(B * N, size_in)
    out = resnet_block_fc(x2d, params)
    jax.block_until_ready(out)
    ref = reference(x2d, w0, b0, w1, b1, ws)
    np.testing.assert_allclose(np.asarray(out), np.asarray(ref), rtol=2e-2, atol=2e-2)

    # Case 2: size_in == size_out -> identity-shortcut variant (f32 residual add).
    size_in2 = 64
    x2 = jax.random.normal(kx2, (B, N, size_in2), jnp.float32)
    w0b, b0b, w1b, b1b, wsb = init_params(kp2, size_in2, zero_fc1=False)
    params2 = prepare_params(w0b, b0b, w1b, b1b, wsb)
    x2d2 = x2.reshape(B * N, size_in2)
    out2 = resnet_block_fc(x2d2, params2)
    jax.block_until_ready(out2)
    ref2 = reference(x2d2, w0b, b0b, w1b, b1b, wsb)
    np.testing.assert_allclose(np.asarray(out2), np.asarray(ref2), rtol=2e-2, atol=2e-2)

    # Spec-faithful init (fc_1.weight zeroed) through the same fused kernel.
    w0c, b0c, w1c, b1c, wsc = init_params(kp1, size_in, size_out, size_h)
    params3 = prepare_params(w0c, b0c, w1c, b1c, wsc)
    out3 = resnet_block_fc(x2d, params3)
    jax.block_until_ready(out3)
    ref3 = reference(x2d, w0c, b0c, w1c, b1c, wsc)
    np.testing.assert_allclose(np.asarray(out3), np.asarray(ref3), rtol=2e-2, atol=2e-2)

    # Feature-tiled fallback path (forced) — both variants, validated at small shapes.
    out4 = resnet_block_fc(x2d, params, force_tiled=True)
    jax.block_until_ready(out4)
    np.testing.assert_allclose(np.asarray(out4), np.asarray(ref), rtol=2e-2, atol=2e-2)
    out5 = resnet_block_fc(x2d2, params2, force_tiled=True)
    jax.block_until_ready(out5)
    np.testing.assert_allclose(np.asarray(out5), np.asarray(ref2), rtol=2e-2, atol=2e-2)

    print("KERNEL_OK")
</pallas_src>

<mosaic_0001>
module attributes {stable_mosaic.version = 11 : i64} {
  func.func @_kernel_shortcut(%arg0: i32, %arg1: memref<16x128xbf16, #tpu.memory_space<vmem>>, %arg2: memref<128x128xbf16, #tpu.memory_space<vmem>>, %arg3: memref<1x128xf32, #tpu.memory_space<vmem>>, %arg4: memref<128x128xbf16, #tpu.memory_space<vmem>>, %arg5: memref<1x128xf32, #tpu.memory_space<vmem>>, %arg6: memref<128x128xbf16, #tpu.memory_space<vmem>>, %arg7: memref<16x128xf32, #tpu.memory_space<vmem>>) attributes {dimension_semantics = [#tpu.dimension_semantics<parallel>], iteration_bounds = array<i64: 1>, scalar_prefetch = 0 : i64, scratch_operands = 0 : i64, tpu.core_type = #tpu.core_type<tc>, window_params = [{transform_indices = @transform_0, window_bounds = array<i64: 16, 128>}, {pipeline_mode = #tpu.pipeline_mode<synchronous>, transform_indices = @transform_1, window_bounds = array<i64: 128, 128>}, {pipeline_mode = #tpu.pipeline_mode<synchronous>, transform_indices = @transform_2, window_bounds = array<i64: 1, 128>}, {pipeline_mode = #tpu.pipeline_mode<synchronous>, transform_indices = @transform_3, window_bounds = array<i64: 128, 128>}, {pipeline_mode = #tpu.pipeline_mode<synchronous>, transform_indices = @transform_4, window_bounds = array<i64: 1, 128>}, {pipeline_mode = #tpu.pipeline_mode<synchronous>, transform_indices = @transform_5, window_bounds = array<i64: 128, 128>}, {transform_indices = @transform_6, window_bounds = array<i64: 16, 128>}]} {
    %c0 = arith.constant 0 : index
    %c0_0 = arith.constant 0 : index
    %0 = vector.load %arg1[%c0, %c0_0] : memref<16x128xbf16, #tpu.memory_space<vmem>>, vector<16x128xbf16>
    %cst = arith.constant 0.000000e+00 : bf16
    %1 = vector.broadcast %cst : bf16 to vector<16x128xbf16>
    %2 = arith.maximumf %0, %1 : vector<16x128xbf16>
    %c0_1 = arith.constant 0 : index
    %c0_2 = arith.constant 0 : index
    %3 = vector.load %arg2[%c0_1, %c0_2] : memref<128x128xbf16, #tpu.memory_space<vmem>>, vector<128x128xbf16>
    %cst_3 = arith.constant dense<0.000000e+00> : vector<16x128xf32>
    %4 = tpu.matmul %2, %3, %cst_3 {dimension_numbers = #tpu.dot_dimension_numbers<[1], [0], [0], [1], [0, 0, 1, 1], [], []>} : vector<16x128xbf16>, vector<128x128xbf16>, vector<16x128xf32> -> vector<16x128xf32>
    %c0_4 = arith.constant 0 : index
    %c0_5 = arith.constant 0 : index
    %5 = vector.load %arg3[%c0_4, %c0_5] : memref<1x128xf32, #tpu.memory_space<vmem>>, vector<1x128xf32>
    %6 = vector.broadcast %5 : vector<1x128xf32> to vector<16x128xf32>
    %7 = arith.addf %4, %6 : vector<16x128xf32>
    %cst_6 = arith.constant 0.000000e+00 : f32
    %8 = vector.broadcast %cst_6 : f32 to vector<16x128xf32>
    %9 = arith.maximumf %7, %8 : vector<16x128xf32>
    %10 = arith.truncf %9 : vector<16x128xf32> to vector<16x128xbf16>
    %c0_7 = arith.constant 0 : index
    %c0_8 = arith.constant 0 : index
    %11 = vector.load %arg4[%c0_7, %c0_8] : memref<128x128xbf16, #tpu.memory_space<vmem>>, vector<128x128xbf16>
    %cst_9 = arith.constant dense<0.000000e+00> : vector<16x128xf32>
    %12 = tpu.matmul %10, %11, %cst_9 {dimension_numbers = #tpu.dot_dimension_numbers<[1], [0], [0], [1], [0, 0, 1, 1], [], []>} : vector<16x128xbf16>, vector<128x128xbf16>, vector<16x128xf32> -> vector<16x128xf32>
    %c0_10 = arith.constant 0 : index
    %c0_11 = arith.constant 0 : index
    %13 = vector.load %arg6[%c0_10, %c0_11] : memref<128x128xbf16, #tpu.memory_space<vmem>>, vector<128x128xbf16>
    %cst_12 = arith.constant dense<0.000000e+00> : vector<16x128xf32>
    %14 = tpu.matmul %0, %13, %cst_12 {dimension_numbers = #tpu.dot_dimension_numbers<[1], [0], [0], [1], [0, 0, 1, 1], [], []>} : vector<16x128xbf16>, vector<128x128xbf16>, vector<16x128xf32> -> vector<16x128xf32>
    %15 = arith.addf %12, %14 : vector<16x128xf32>
    %c0_13 = arith.constant 0 : index
    %c0_14 = arith.constant 0 : index
    %16 = vector.load %arg5[%c0_13, %c0_14] : memref<1x128xf32, #tpu.memory_space<vmem>>, vector<1x128xf32>
    %17 = vector.broadcast %16 : vector<1x128xf32> to vector<16x128xf32>
    %18 = arith.addf %15, %17 : vector<16x128xf32>
    %c0_15 = arith.constant 0 : index
    %c0_16 = arith.constant 0 : index
    %19 = vector.load %arg7[%c0_15, %c0_16] : memref<16x128xf32, #tpu.memory_space<vmem>>, vector<16x128xf32>
    tpu.vector_store %arg7[%c0_15, %c0_16], %18 {strides = array<i32>} : memref<16x128xf32, #tpu.memory_space<vmem>>, vector<16x128xf32>,
    return
  }
  func.func @transform_0(%arg0: i32) -> (i32, i32) {
    %c0_i32 = arith.constant 0 : i32
    %c0_i32_0 = arith.constant 0 : i32
    return %arg0, %c0_i32 : i32, i32
  }
  func.func @transform_1(%arg0: i32) -> (i32, i32) {
    %c0_i32 = arith.constant 0 : i32
    %c0_i32_0 = arith.constant 0 : i32
    %c0_i32_1 = arith.constant 0 : i32
    return %c0_i32, %c0_i32_0 : i32, i32
  }
  func.func @transform_2(%arg0: i32) -> (i32, i32) {
    %c0_i32 = arith.constant 0 : i32
    %c0_i32_0 = arith.constant 0 : i32
    %c0_i32_1 = arith.constant 0 : i32
    return %c0_i32, %c0_i32_0 : i32, i32
  }
  func.func @transform_3(%arg0: i32) -> (i32, i32) {
    %c0_i32 = arith.constant 0 : i32
    %c0_i32_0 = arith.constant 0 : i32
    %c0_i32_1 = arith.constant 0 : i32
    return %c0_i32, %c0_i32_0 : i32, i32
  }
  func.func @transform_4(%arg0: i32) -> (i32, i32) {
    %c0_i32 = arith.constant 0 : i32
    %c0_i32_0 = arith.constant 0 : i32
    %c0_i32_1 = arith.constant 0 : i32
    return %c0_i32, %c0_i32_0 : i32, i32
  }
  func.func @transform_5(%arg0: i32) -> (i32, i32) {
    %c0_i32 = arith.constant 0 : i32
    %c0_i32_0 = arith.constant 0 : i32
    %c0_i32_1 = arith.constant 0 : i32
    return %c0_i32, %c0_i32_0 : i32, i32
  }
  func.func @transform_6(%arg0: i32) -> (i32, i32) {
    %c0_i32 = arith.constant 0 : i32
    %c0_i32_0 = arith.constant 0 : i32
    return %arg0, %c0_i32 : i32, i32
  }
}

module attributes {stable_mosaic.version = 11 : i64} {
  func.func @_kernel_shortcut(%arg0: i32, %arg1: memref<16x128xbf16, #tpu.memory_space<vmem>>, %arg2: memref<128x128xbf16, #tpu.memory_space<vmem>>, %arg3: memref<1x128xf32, #tpu.memory_space<vmem>>, %arg4: memref<128x128xbf16, #tpu.memory_space<vmem>>, %arg5: memref<1x128xf32, #tpu.memory_space<vmem>>, %arg6: memref<128x128xbf16, #tpu.memory_space<vmem>>, %arg7: memref<16x128xf32, #tpu.memory_space<vmem>>) attributes {dimension_semantics = [#tpu.dimension_semantics<parallel>], iteration_bounds = array<i64: 1>, scalar_prefetch = 0 : i64, scratch_operands = 0 : i64, tpu.core_type = #tpu.core_type<tc>, window_params = [{transform_indices = @transform_0, window_bounds = array<i64: 16, 128>}, {pipeline_mode = #tpu.pipeline_mode<synchronous>, transform_indices = @transform_1, window_bounds = array<i64: 128, 128>}, {pipeline_mode = #tpu.pipeline_mode<synchronous>, transform_indices = @transform_2, window_bounds = array<i64: 1, 128>}, {pipeline_mode = #tpu.pipeline_mode<synchronous>, transform_indices = @transform_3, window_bounds = array<i64: 128, 128>}, {pipeline_mode = #tpu.pipeline_mode<synchronous>, transform_indices = @transform_4, window_bounds = array<i64: 1, 128>}, {pipeline_mode = #tpu.pipeline_mode<synchronous>, transform_indices = @transform_5, window_bounds = array<i64: 128, 128>}, {transform_indices = @transform_6, window_bounds = array<i64: 16, 128>}]} {
    %c0 = arith.constant 0 : index
    %c0_0 = arith.constant 0 : index
    %0 = vector.load %arg1[%c0, %c0_0] : memref<16x128xbf16, #tpu.memory_space<vmem>>, vector<16x128xbf16>
    %cst = arith.constant 0.000000e+00 : bf16
    %1 = vector.broadcast %cst : bf16 to vector<16x128xbf16>
    %2 = arith.maximumf %0, %1 : vector<16x128xbf16>
    %c0_1 = arith.constant 0 : index
    %c0_2 = arith.constant 0 : index
    %3 = vector.load %arg2[%c0_1, %c0_2] : memref<128x128xbf16, #tpu.memory_space<vmem>>, vector<128x128xbf16>
    %cst_3 = arith.constant dense<0.000000e+00> : vector<16x128xf32>
    %4 = tpu.matmul %2, %3, %cst_3 {dimension_numbers = #tpu.dot_dimension_numbers<[1], [0], [0], [1], [0, 0, 1, 1], [], []>} : vector<16x128xbf16>, vector<128x128xbf16>, vector<16x128xf32> -> vector<16x128xf32>
    %c0_4 = arith.constant 0 : index
    %c0_5 = arith.constant 0 : index
    %5 = vector.load %arg3[%c0_4, %c0_5] : memref<1x128xf32, #tpu.memory_space<vmem>>, vector<1x128xf32>
    %6 = vector.broadcast %5 : vector<1x128xf32> to vector<16x128xf32>
    %7 = arith.addf %4, %6 : vector<16x128xf32>
    %cst_6 = arith.constant 0.000000e+00 : f32
    %8 = vector.broadcast %cst_6 : f32 to vector<16x128xf32>
    %9 = arith.maximumf %7, %8 : vector<16x128xf32>
    %10 = arith.truncf %9 : vector<16x128xf32> to vector<16x128xbf16>
    %c0_7 = arith.constant 0 : index
    %c0_8 = arith.constant 0 : index
    %11 = vector.load %arg4[%c0_7, %c0_8] : memref<128x128xbf16, #tpu.memory_space<vmem>>, vector<128x128xbf16>
    %cst_9 = arith.constant dense<0.000000e+00> : vector<16x128xf32>
    %12 = tpu.matmul %10, %11, %cst_9 {dimension_numbers = #tpu.dot_dimension_numbers<[1], [0], [0], [1], [0, 0, 1, 1], [], []>} : vector<16x128xbf16>, vector<128x128xbf16>, vector<16x128xf32> -> vector<16x128xf32>
    %c0_10 = arith.constant 0 : index
    %c0_11 = arith.constant 0 : index
    %13 = vector.load %arg6[%c0_10, %c0_11] : memref<128x128xbf16, #tpu.memory_space<vmem>>, vector<128x128xbf16>
    %cst_12 = arith.constant dense<0.000000e+00> : vector<16x128xf32>
    %14 = tpu.matmul %0, %13, %cst_12 {dimension_numbers = #tpu.dot_dimension_numbers<[1], [0], [0], [1], [0, 0, 1, 1], [], []>} : vector<16x128xbf16>, vector<128x128xbf16>, vector<16x128xf32> -> vector<16x128xf32>
    %15 = arith.addf %12, %14 : vector<16x128xf32>
    %c0_13 = arith.constant 0 : index
    %c0_14 = arith.constant 0 : index
    %16 = vector.load %arg5[%c0_13, %c0_14] : memref<1x128xf32, #tpu.memory_space<vmem>>, vector<1x128xf32>
    %17 = vector.broadcast %16 : vector<1x128xf32> to vector<16x128xf32>
    %18 = arith.addf %15, %17 : vector<16x128xf32>
    %c0_15 = arith.constant 0 : index
    %c0_16 = arith.constant 0 : index
    %19 = vector.load %arg7[%c0_15, %c0_16] : memref<16x128xf32, #tpu.memory_space<vmem>>, vector<16x128xf32>
    tpu.vector_store %arg7[%c0_15, %c0_16], %18 {strides = array<i32>} : memref<16x128xf32, #tpu.memory_space<vmem>>, vector<16x128xf32>,
    return
  }
  func.func @transform_0(%arg0: i32) -> (i32, i32) {
    %c0_i32 = arith.constant 0 : i32
    %c0_i32_0 = arith.constant 0 : i32
    return %arg0, %c0_i32 : i32, i32
  }
  func.func @transform_1(%arg0: i32) -> (i32, i32) {
    %c0_i32 = arith.constant 0 : i32
    %c0_i32_0 = arith.constant 0 : i32
    %c0_i32_1 = arith.constant 0 : i32
    return %c0_i32, %c0_i32_0 : i32, i32
  }
  func.func @transform_2(%arg0: i32) -> (i32, i32) {
    %c0_i32 = arith.constant 0 : i32
    %c0_i32_0 = arith.constant 0 : i32
    %c0_i32_1 = arith.constant 0 : i32
    return %c0_i32, %c0_i32_0 : i32, i32
  }
  func.func @transform_3(%arg0: i32) -> (i32, i32) {
    %c0_i32 = arith.constant 0 : i32
    %c0_i32_0 = arith.constant 0 : i32
    %c0_i32_1 = arith.constant 0 : i32
    return %c0_i32, %c0_i32_0 : i32, i32
  }
  func.func @transform_4(%arg0: i32) -> (i32, i32) {
    %c0_i32 = arith.constant 0 : i32
    %c0_i32_0 = arith.constant 0 : i32
    %c0_i32_1 = arith.constant 0 : i32
    return %c0_i32, %c0_i32_0 : i32, i32
  }
  func.func @transform_5(%arg0: i32) -> (i32, i32) {
    %c0_i32 = arith.constant 0 : i32
    %c0_i32_0 = arith.constant 0 : i32
    %c0_i32_1 = arith.constant 0 : i32
    return %c0_i32, %c0_i32_0 : i32, i32
  }
  func.func @transform_6(%arg0: i32) -> (i32, i32) {
    %c0_i32 = arith.constant 0 : i32
    %c0_i32_0 = arith.constant 0 : i32
    return %arg0, %c0_i32 : i32, i32
  }
}

</mosaic_0001>

<llo_original>
// kernel: tpu_custom_call.1
$region0: #{tpu_custom_call.1}
  #allocation0 [shape = 'u32[]', space=smem, size = 0x4, offset = 0x4, fixed_abs, tag = 'smem constant byte address 0x4 - core index']
  #allocation1 [shape = 'u32[72,128]{1,0:T(1,128)}', space=vmem, size = 0x9000, scoped, tag = 'internal scratch']
  %s0 = inlined_call_operand.hbm [shape: bf16[16,128], index: 0, kind: input, shape index: {}]
  %s1 = inlined_call_operand.hbm [shape: bf16[128,128], index: 1, kind: input, shape index: {}]
  %s2 = inlined_call_operand.vmem [shape: f32[1,128], index: 2, kind: input, shape index: {}]
  %s3 = inlined_call_operand.hbm [shape: bf16[128,128], index: 3, kind: input, shape index: {}]
  %s4 = inlined_call_operand.vmem [shape: f32[1,128], index: 4, kind: input, shape index: {}]
  %s5 = inlined_call_operand.hbm [shape: bf16[128,128], index: 5, kind: input, shape index: {}]
  %s6 = inlined_call_operand.hbm [shape: f32[16,128], index: 6, kind: output, shape index: {}]
  %s7 = sld [smem:[#allocation0]]
  $region50: #{tpu_custom_call.1} parent=0
    _
  %s9 = ssub.s32 1, %s7
  %s10 = scalar_select 0, %s9, %s7
  $region1: #{tpu_custom_call.1} parent=0
    #allocation2 [shape = 'u8[4096]{0}', space=vmem, size = 0x1000, scoped, tag = 'input window, operand 0, single buffered']
    #allocation3 [shape = 's32[1]{0}', space=sflag, size = 0x4, scoped, tag = 'scoped memory for tpu_custom_call.1']
    #allocation4 [shape = 's32[1]{0}', space=sflag, size = 0x4, scoped, tag = 'scoped memory for tpu_custom_call.1']
    #allocation5 [shape = 'u8[32768]{0}', space=vmem, size = 0x8000, scoped, tag = 'input window, operand 1, single buffered']
    #allocation6 [shape = 's32[1]{0}', space=sflag, size = 0x4, scoped, tag = 'scoped memory for tpu_custom_call.1']
    #allocation7 [shape = 'u8[32768]{0}', space=vmem, size = 0x8000, scoped, tag = 'input window, operand 3, single buffered']
    #allocation8 [shape = 'u8[32768]{0}', space=vmem, size = 0x8000, scoped, tag = 'input window, operand 5, single buffered']
    #allocation9 [shape = 's32[1]{0}', space=sflag, size = 0x4, scoped, tag = 'scoped memory for tpu_custom_call.1']
    #allocation10 [shape = 'u8[8192]{0}', space=vmem, size = 0x2000, scoped, tag = 'output window, operand 0, single buffered']
    %11 = vsyncpa [#allocation3], 0
    %12 = vsyncpa [#allocation6], 0
    %13 = vsyncpa [#allocation9], 0
    %14 = vsyncpa [#allocation4], 0
    // Predicated region
    $region2: #{tpu_custom_call.1} parent=1 // pred_check
      _
    $region3: #{tpu_custom_call.1} parent=1 // pred_check_branch
      %16 = sbr.rel (0) target = $region5
    $region4: #{tpu_custom_call.1} parent=1 // pred_region
      %18 = vsyncadd [#allocation3], 0
      %s19 = sshll.u32 %s0, 4
      %s20 = int_to_ptr.hbm [resolvable:$true] %s19
      %s21 = sshll.u32 [#allocation2], 4
      %s22 = int_to_ptr.vmem [resolvable:$true] %s21
      %27 = dma.hbm_to_vmem [thread:$0]  %s20, 128, %s22, [#allocation3], 64, 64, 4
    $region5: #{tpu_custom_call.1} parent=1 // pred_fallthru
      _
    // Predicated region
    $region6: #{tpu_custom_call.1} parent=1 // pred_check
      _
    $region7: #{tpu_custom_call.1} parent=1 // pred_check_branch
      %29 = sbr.rel (0) target = $region9
    $region8: #{tpu_custom_call.1} parent=1 // pred_region
      %31 = vsyncadd [#allocation6], 0
      %s32 = sshll.u32 %s1, 4
      %s33 = int_to_ptr.hbm [resolvable:$true] %s32
      %s34 = sshll.u32 [#allocation5], 4
      %s35 = int_to_ptr.vmem [resolvable:$true] %s34
      %40 = dma.hbm_to_vmem [thread:$0]  %s33, 1024, %s35, [#allocation6], 64, 64, 4
    $region9: #{tpu_custom_call.1} parent=1 // pred_fallthru
      _
    // Predicated region
    $region10: #{tpu_custom_call.1} parent=1 // pred_check
      _
    $region11: #{tpu_custom_call.1} parent=1 // pred_check_branch
      %42 = sbr.rel (0) target = $region13
    $region12: #{tpu_custom_call.1} parent=1 // pred_region
      _
    $region13: #{tpu_custom_call.1} parent=1 // pred_fallthru
      _
    // Predicated region
    $region14: #{tpu_custom_call.1} parent=1 // pred_check
      _
    $region15: #{tpu_custom_call.1} parent=1 // pred_check_branch
      %44 = sbr.rel (0) target = $region17
    $region16: #{tpu_custom_call.1} parent=1 // pred_region
      %46 = vsyncadd [#allocation6], 0
      %s47 = sshll.u32 %s3, 4
      %s48 = int_to_ptr.hbm [resolvable:$true] %s47
      %s49 = sshll.u32 [#allocation7], 4
      %s50 = int_to_ptr.vmem [resolvable:$true] %s49
      %55 = dma.hbm_to_vmem [thread:$0]  %s48, 1024, %s50, [#allocation6], 64, 64, 4
    $region17: #{tpu_custom_call.1} parent=1 // pred_fallthru
      _
    // Predicated region
    $region18: #{tpu_custom_call.1} parent=1 // pred_check
      _
    $region19: #{tpu_custom_call.1} parent=1 // pred_check_branch
      %57 = sbr.rel (0) target = $region21
    $region20: #{tpu_custom_call.1} parent=1 // pred_region
      _
    $region21: #{tpu_custom_call.1} parent=1 // pred_fallthru
      _
    // Predicated region
    $region22: #{tpu_custom_call.1} parent=1 // pred_check
      _
    $region23: #{tpu_custom_call.1} parent=1 // pred_check_branch
      %59 = sbr.rel (0) target = $region25
    $region24: #{tpu_custom_call.1} parent=1 // pred_region
      %61 = vsyncadd [#allocation9], 0
      %s62 = sshll.u32 %s5, 4
      %s63 = int_to_ptr.hbm [resolvable:$true] %s62
      %s64 = sshll.u32 [#allocation8], 4
      %s65 = int_to_ptr.vmem [resolvable:$true] %s64
      %70 = dma.hbm_to_vmem [thread:$0]  %s63, 1024, %s65, [#allocation9], 64, 64, 4
    $region25: #{tpu_custom_call.1} parent=1 // pred_fallthru
      _
    // Predicated region
    $region26: #{tpu_custom_call.1} parent=1 // pred_check
      _
    $region27: #{tpu_custom_call.1} parent=1 // pred_check_branch
      %72 = sbr.rel (0) target = $region29
    $region28: #{tpu_custom_call.1} parent=1 // pred_region
      %74 = dma.done [#allocation3], 128
    $region29: #{tpu_custom_call.1} parent=1 // pred_fallthru
      _
    // Predicated region
    $region30: #{tpu_custom_call.1} parent=1 // pred_check
      _
    $region31: #{tpu_custom_call.1} parent=1 // pred_check_branch
      %76 = sbr.rel (0) target = $region33
    $region32: #{tpu_custom_call.1} parent=1 // pred_region
      %78 = dma.done [#allocation6], 1024
    $region33: #{tpu_custom_call.1} parent=1 // pred_fallthru
      _
    // Predicated region
    $region34: #{tpu_custom_call.1} parent=1 // pred_check
      _
    $region35: #{tpu_custom_call.1} parent=1 // pred_check_branch
      %80 = sbr.rel (0) target = $region37
    $region36: #{tpu_custom_call.1} parent=1 // pred_region
      %82 = dma.done [#allocation6], 1024
    $region37: #{tpu_custom_call.1} parent=1 // pred_fallthru
      _
    // Predicated region
    $region38: #{tpu_custom_call.1} parent=1 // pred_check
      _
    $region39: #{tpu_custom_call.1} parent=1 // pred_check_branch
      %84 = sbr.rel (0) target = $region41
    $region40: #{tpu_custom_call.1} parent=1 // pred_region
      %86 = dma.done [#allocation9], 1024
    $region41: #{tpu_custom_call.1} parent=1 // pred_fallthru
      _
    %v87 = vld [vmem:[#allocation2] sm:$0xf]
    %v88 = vld [vmem:[#allocation2 + $0x4] sm:$0xf]
    %v89 = vunpack.c.l.bf16 %v87
    %v90 = vunpack.c.l.bf16 %v88
    %v91 = vmax.f32 %v89, 0.0
    %v92 = vmax.f32 %v90, 0.0
    %v93 = vpack.c.bf16 %v92, %v91
    %v94 = vld [vmem:[#allocation5] sm:$0xf]
    %v95 = vld [vmem:[#allocation5 + $0x4] sm:$0xf]
    %v96 = vld [vmem:[#allocation5 + $0x8] sm:$0xf]
    %v97 = vld [vmem:[#allocation5 + $0xc] sm:$0xf]
    %v98 = vld [vmem:[#allocation5 + $0x10] sm:$0xf]
    %v99 = vld [vmem:[#allocation5 + $0x14] sm:$0xf]
    %v100 = vld [vmem:[#allocation5 + $0x18] sm:$0xf]
    %v101 = vld [vmem:[#allocation5 + $0x1c] sm:$0xf]
    %v102 = vld [vmem:[#allocation5 + $0x20] sm:$0xf]
    %v103 = vld [vmem:[#allocation5 + $0x24] sm:$0xf]
    %v104 = vld [vmem:[#allocation5 + $0x28] sm:$0xf]
    %v105 = vld [vmem:[#allocation5 + $0x2c] sm:$0xf]
    %v106 = vld [vmem:[#allocation5 + $0x30] sm:$0xf]
    %v107 = vld [vmem:[#allocation5 + $0x34] sm:$0xf]
    %v108 = vld [vmem:[#allocation5 + $0x38] sm:$0xf]
    %v109 = vld [vmem:[#allocation5 + $0x3c] sm:$0xf]
    %v110 = vld [vmem:[%s2] sm:$0x1]
    %v112 = vperm.slane %v110, 0
    %v130 = vunpack.c.l.b16 %v94
    %v131 = vunpack.c.l.b16 %v95
    %v132 = vunpack.c.l.b16 %v96
    %v133 = vunpack.c.l.b16 %v97
    %v134 = vunpack.c.l.b16 %v98
    %v135 = vunpack.c.l.b16 %v99
    %v136 = vunpack.c.l.b16 %v100
    %v137 = vunpack.c.l.b16 %v101
    %v138 = vunpack.c.l.b16 %v102
    %v139 = vunpack.c.l.b16 %v103
    %v140 = vunpack.c.l.b16 %v104
    %v141 = vunpack.c.l.b16 %v105
    %v142 = vunpack.c.l.b16 %v106
    %v143 = vunpack.c.l.b16 %v107
    %v144 = vunpack.c.l.b16 %v108
    %v145 = vunpack.c.l.b16 %v109
    %v146 = vpack.c.b16 %v131, %v130
    %v147 = vpack.c.b16 %v133, %v132
    %v148 = vpack.c.b16 %v135, %v134
    %v149 = vpack.c.b16 %v137, %v136
    %v150 = vpack.c.b16 %v139, %v138
    %v151 = vpack.c.b16 %v141, %v140
    %v152 = vpack.c.b16 %v143, %v142
    %v153 = vpack.c.b16 %v145, %v144
    %162 = vmatpush.bf16.msra.mxu0 %v153
    %163 = vmatpush.bf16.msra.mxu0 %v152
    %164 = vmatpush.bf16.msra.mxu0 %v151
    %165 = vmatpush.bf16.msra.mxu0 %v150
    %166 = vmatpush.bf16.msra.mxu0 %v149
    %167 = vmatpush.bf16.msra.mxu0 %v148
    %168 = vmatpush.bf16.msra.mxu0 %v147
    %169 = vmatpush.bf16.msra.mxu0 %v146
    %170 = vmatmul.bf16.gmra.mxu0 %v93
    %v171 = vpop.f32.mrf.mxu0
    %v172 = vadd.f32 %v112, %v171
    %v173 = vpop.f32.mrf.mxu0
    %v174 = vadd.f32 %v112, %v173
    %175 = vdwg.mxu0
    %v176 = vmax.f32 %v172, 0.0
    %v177 = vmax.f32 %v174, 0.0
    %v178 = vpack.c.bf16 %v177, %v176
    %v179 = vld [vmem:[#allocation7] sm:$0xf]
    %v180 = vld [vmem:[#allocation7 + $0x4] sm:$0xf]
    %v181 = vld [vmem:[#allocation7 + $0x8] sm:$0xf]
    %v182 = vld [vmem:[#allocation7 + $0xc] sm:$0xf]
    %v183 = vld [vmem:[#allocation7 + $0x10] sm:$0xf]
    %v184 = vld [vmem:[#allocation7 + $0x14] sm:$0xf]
    %v185 = vld [vmem:[#allocation7 + $0x18] sm:$0xf]
    %v186 = vld [vmem:[#allocation7 + $0x1c] sm:$0xf]
    %v187 = vld [vmem:[#allocation7 + $0x20] sm:$0xf]
    %v188 = vld [vmem:[#allocation7 + $0x24] sm:$0xf]
    %v189 = vld [vmem:[#allocation7 + $0x28] sm:$0xf]
    %v190 = vld [vmem:[#allocation7 + $0x2c] sm:$0xf]
    %v191 = vld [vmem:[#allocation7 + $0x30] sm:$0xf]
    %v192 = vld [vmem:[#allocation7 + $0x34] sm:$0xf]
    %v193 = vld [vmem:[#allocation7 + $0x38] sm:$0xf]
    %v194 = vld [vmem:[#allocation7 + $0x3c] sm:$0xf]
    %v195 = vld [vmem:[#allocation8] sm:$0xf]
    %v196 = vld [vmem:[#allocation8 + $0x4] sm:$0xf]
    %v197 = vld [vmem:[#allocation8 + $0x8] sm:$0xf]
    %v198 = vld [vmem:[#allocation8 + $0xc] sm:$0xf]
    %v199 = vld [vmem:[#allocation8 + $0x10] sm:$0xf]
    %v200 = vld [vmem:[#allocation8 + $0x14] sm:$0xf]
    %v201 = vld [vmem:[#allocation8 + $0x18] sm:$0xf]
    %v202 = vld [vmem:[#allocation8 + $0x1c] sm:$0xf]
    %v203 = vld [vmem:[#allocation8 + $0x20] sm:$0xf]
    %v204 = vld [vmem:[#allocation8 + $0x24] sm:$0xf]
    %v205 = vld [vmem:[#allocation8 + $0x28] sm:$0xf]
    %v206 = vld [vmem:[#allocation8 + $0x2c] sm:$0xf]
    %v207 = vld [vmem:[#allocation8 + $0x30] sm:$0xf]
    %v208 = vld [vmem:[#allocation8 + $0x34] sm:$0xf]
    %v209 = vld [vmem:[#allocation8 + $0x38] sm:$0xf]
    %v210 = vld [vmem:[#allocation8 + $0x3c] sm:$0xf]
    %v213 = vunpack.c.l.b16 %v87
    %v214 = vunpack.c.l.b16 %v88
    %v215 = vpack.c.b16 %v214, %v213
    %v233 = vunpack.c.l.b16 %v195
    %v234 = vunpack.c.l.b16 %v196
    %v235 = vunpack.c.l.b16 %v197
    %v236 = vunpack.c.l.b16 %v198
    %v237 = vunpack.c.l.b16 %v199
    %v238 = vunpack.c.l.b16 %v200
    %v239 = vunpack.c.l.b16 %v201
    %v240 = vunpack.c.l.b16 %v202
    %v241 = vunpack.c.l.b16 %v203
    %v242 = vunpack.c.l.b16 %v204
    %v243 = vunpack.c.l.b16 %v205
    %v244 = vunpack.c.l.b16 %v206
    %v245 = vunpack.c.l.b16 %v207
    %v246 = vunpack.c.l.b16 %v208
    %v247 = vunpack.c.l.b16 %v209
    %v248 = vunpack.c.l.b16 %v210
    %v249 = vpack.c.b16 %v234, %v233
    %v250 = vpack.c.b16 %v236, %v235
    %v251 = vpack.c.b16 %v238, %v237
    %v252 = vpack.c.b16 %v240, %v239
    %v253 = vpack.c.b16 %v242, %v241
    %v254 = vpack.c.b16 %v244, %v243
    %v255 = vpack.c.b16 %v246, %v245
    %v256 = vpack.c.b16 %v248, %v247
    %265 = vmatpush.bf16.msra.mxu0 %v256
    %266 = vmatpush.bf16.msra.mxu0 %v255
    %267 = vmatpush.bf16.msra.mxu0 %v254
    %268 = vmatpush.bf16.msra.mxu0 %v253
    %269 = vmatpush.bf16.msra.mxu0 %v252
    %270 = vmatpush.bf16.msra.mxu0 %v251
    %271 = vmatpush.bf16.msra.mxu0 %v250
    %272 = vmatpush.bf16.msra.mxu0 %v249
    %273 = vmatmul.bf16.gmra.mxu0 %v215
    %v274 = vpop.f32.mrf.mxu0
    %v275 = vadd.f32 0.0, %v274
    %v276 = vpop.f32.mrf.mxu0
    %v277 = vadd.f32 0.0, %v276
    %278 = vdwg.mxu0
    %v295 = vunpack.c.l.b16 %v179
    %v296 = vunpack.c.l.b16 %v180
    %v297 = vunpack.c.l.b16 %v181
    %v298 = vunpack.c.l.b16 %v182
    %v299 = vunpack.c.l.b16 %v183
    %v300 = vunpack.c.l.b16 %v184
    %v301 = vunpack.c.l.b16 %v185
    %v302 = vunpack.c.l.b16 %v186
    %v303 = vunpack.c.l.b16 %v187
    %v304 = vunpack.c.l.b16 %v188
    %v305 = vunpack.c.l.b16 %v189
    %v306 = vunpack.c.l.b16 %v190
    %v307 = vunpack.c.l.b16 %v191
    %v308 = vunpack.c.l.b16 %v192
    %v309 = vunpack.c.l.b16 %v193
    %v310 = vunpack.c.l.b16 %v194
    %v311 = vpack.c.b16 %v296, %v295
    %v312 = vpack.c.b16 %v298, %v297
    %v313 = vpack.c.b16 %v300, %v299
    %v314 = vpack.c.b16 %v302, %v301
    %v315 = vpack.c.b16 %v304, %v303
    %v316 = vpack.c.b16 %v306, %v305
    %v317 = vpack.c.b16 %v308, %v307
    %v318 = vpack.c.b16 %v310, %v309
    %327 = vmatpush.bf16.msra.mxu0 %v318
    %328 = vmatpush.bf16.msra.mxu0 %v317
    %329 = vmatpush.bf16.msra.mxu0 %v316
    %330 = vmatpush.bf16.msra.mxu0 %v315
    %331 = vmatpush.bf16.msra.mxu0 %v314
    %332 = vmatpush.bf16.msra.mxu0 %v313
    %333 = vmatpush.bf16.msra.mxu0 %v312
    %334 = vmatpush.bf16.msra.mxu0 %v311
    %335 = vmatmul.bf16.gmra.mxu0 %v178
    %v336 = vpop.f32.mrf.mxu0
    %v337 = vadd.f32 %v275, %v336
    %v338 = vpop.f32.mrf.mxu0
    %v339 = vadd.f32 %v277, %v338
    %340 = vdwg.mxu0
    %v341 = vld [vmem:[%s4] sm:$0x1]
    %v343 = vperm.slane %v341, 0
    %v345 = vadd.f32 %v337, %v343
    %v346 = vadd.f32 %v339, %v343
    %347 = vst [vmem:[#allocation10] sm:$0xff] %v345
    %348 = vst [vmem:[#allocation10 + $0x8] sm:$0xff] %v346
    // Predicated region
    $region42: #{tpu_custom_call.1} parent=1 // pred_check
      _
    $region43: #{tpu_custom_call.1} parent=1 // pred_check_branch
      %350 = sbr.rel (0) target = $region45
    $region44: #{tpu_custom_call.1} parent=1 // pred_region
      %352 = vsyncadd [#allocation4], 0
      %s353 = sshll.u32 [#allocation10], 4
      %s354 = int_to_ptr.vmem [resolvable:$true] %s353
      %s355 = sshll.u32 %s6, 4
      %s356 = int_to_ptr.hbm [resolvable:$true] %s355
      %361 = dma.vmem_to_hbm [thread:$0]  %s354, 256, %s356, [#allocation4], 128, 128, 8
    $region45: #{tpu_custom_call.1} parent=1 // pred_fallthru
      _
    // Predicated region
    $region46: #{tpu_custom_call.1} parent=1 // pred_check
      _
    $region47: #{tpu_custom_call.1} parent=1 // pred_check_branch
      %363 = sbr.rel (0) target = $region49
    $region48: #{tpu_custom_call.1} parent=1 // pred_region
      %365 = dma.done [#allocation4], 256
    $region49: #{tpu_custom_call.1} parent=1 // pred_fallthru
      _
    %366 = vsyncpa [#allocation3], 1
    %367 = vsyncpa [#allocation6], 1
    %368 = vsyncpa [#allocation9], 1
    %369 = vsyncpa [#allocation4], 1

// kernel: tpu_custom_call.1
$region0: #{tpu_custom_call.1}
  #allocation0 [shape = 'u32[]', space=smem, size = 0x4, offset = 0x4, fixed_abs, tag = 'smem constant byte address 0x4 - core index']
  #allocation1 [shape = 'u32[72,128]{1,0:T(1,128)}', space=vmem, size = 0x9000, scoped, tag = 'internal scratch']
  %s0 = inlined_call_operand.hbm [shape: bf16[16,128], index: 0, kind: input, shape index: {}]
  %s1 = inlined_call_operand.hbm [shape: bf16[128,128], index: 1, kind: input, shape index: {}]
  %s2 = inlined_call_operand.vmem [shape: f32[1,128], index: 2, kind: input, shape index: {}]
  %s3 = inlined_call_operand.hbm [shape: bf16[128,128], index: 3, kind: input, shape index: {}]
  %s4 = inlined_call_operand.vmem [shape: f32[1,128], index: 4, kind: input, shape index: {}]
  %s5 = inlined_call_operand.hbm [shape: bf16[128,128], index: 5, kind: input, shape index: {}]
  %s6 = inlined_call_operand.hbm [shape: f32[16,128], index: 6, kind: output, shape index: {}]
  %s7 = sld [smem:[#allocation0]]
  $region50: #{tpu_custom_call.1} parent=0
    _
  %s9 = ssub.s32 1, %s7
  %s10 = scalar_select 0, %s9, %s7
  $region1: #{tpu_custom_call.1} parent=0
    #allocation2 [shape = 'u8[4096]{0}', space=vmem, size = 0x1000, scoped, tag = 'input window, operand 0, single buffered']
    #allocation3 [shape = 's32[1]{0}', space=sflag, size = 0x4, scoped, tag = 'scoped memory for tpu_custom_call.1']
    #allocation4 [shape = 's32[1]{0}', space=sflag, size = 0x4, scoped, tag = 'scoped memory for tpu_custom_call.1']
    #allocation5 [shape = 'u8[32768]{0}', space=vmem, size = 0x8000, scoped, tag = 'input window, operand 1, single buffered']
    #allocation6 [shape = 's32[1]{0}', space=sflag, size = 0x4, scoped, tag = 'scoped memory for tpu_custom_call.1']
    #allocation7 [shape = 'u8[32768]{0}', space=vmem, size = 0x8000, scoped, tag = 'input window, operand 3, single buffered']
    #allocation8 [shape = 'u8[32768]{0}', space=vmem, size = 0x8000, scoped, tag = 'input window, operand 5, single buffered']
    #allocation9 [shape = 's32[1]{0}', space=sflag, size = 0x4, scoped, tag = 'scoped memory for tpu_custom_call.1']
    #allocation10 [shape = 'u8[8192]{0}', space=vmem, size = 0x2000, scoped, tag = 'output window, operand 0, single buffered']
    %11 = vsyncpa [#allocation3], 0
    %12 = vsyncpa [#allocation6], 0
    %13 = vsyncpa [#allocation9], 0
    %14 = vsyncpa [#allocation4], 0
    // Predicated region
    $region2: #{tpu_custom_call.1} parent=1 // pred_check
      _
    $region3: #{tpu_custom_call.1} parent=1 // pred_check_branch
      %16 = sbr.rel (0) target = $region5
    $region4: #{tpu_custom_call.1} parent=1 // pred_region
      %18 = vsyncadd [#allocation3], 0
      %s19 = sshll.u32 %s0, 4
      %s20 = int_to_ptr.hbm [resolvable:$true] %s19
      %s21 = sshll.u32 [#allocation2], 4
      %s22 = int_to_ptr.vmem [resolvable:$true] %s21
      %27 = dma.hbm_to_vmem [thread:$0]  %s20, 128, %s22, [#allocation3], 64, 64, 4
    $region5: #{tpu_custom_call.1} parent=1 // pred_fallthru
      _
    // Predicated region
    $region6: #{tpu_custom_call.1} parent=1 // pred_check
      _
    $region7: #{tpu_custom_call.1} parent=1 // pred_check_branch
      %29 = sbr.rel (0) target = $region9
    $region8: #{tpu_custom_call.1} parent=1 // pred_region
      %31 = vsyncadd [#allocation6], 0
      %s32 = sshll.u32 %s1, 4
      %s33 = int_to_ptr.hbm [resolvable:$true] %s32
      %s34 = sshll.u32 [#allocation5], 4
      %s35 = int_to_ptr.vmem [resolvable:$true] %s34
      %40 = dma.hbm_to_vmem [thread:$0]  %s33, 1024, %s35, [#allocation6], 64, 64, 4
    $region9: #{tpu_custom_call.1} parent=1 // pred_fallthru
      _
    // Predicated region
    $region10: #{tpu_custom_call.1} parent=1 // pred_check
      _
    $region11: #{tpu_custom_call.1} parent=1 // pred_check_branch
      %42 = sbr.rel (0) target = $region13
    $region12: #{tpu_custom_call.1} parent=1 // pred_region
      _
    $region13: #{tpu_custom_call.1} parent=1 // pred_fallthru
      _
    // Predicated region
    $region14: #{tpu_custom_call.1} parent=1 // pred_check
      _
    $region15: #{tpu_custom_call.1} parent=1 // pred_check_branch
      %44 = sbr.rel (0) target = $region17
    $region16: #{tpu_custom_call.1} parent=1 // pred_region
      %46 = vsyncadd [#allocation6], 0
      %s47 = sshll.u32 %s3, 4
      %s48 = int_to_ptr.hbm [resolvable:$true] %s47
      %s49 = sshll.u32 [#allocation7], 4
      %s50 = int_to_ptr.vmem [resolvable:$true] %s49
      %55 = dma.hbm_to_vmem [thread:$0]  %s48, 1024, %s50, [#allocation6], 64, 64, 4
    $region17: #{tpu_custom_call.1} parent=1 // pred_fallthru
      _
    // Predicated region
    $region18: #{tpu_custom_call.1} parent=1 // pred_check
      _
    $region19: #{tpu_custom_call.1} parent=1 // pred_check_branch
      %57 = sbr.rel (0) target = $region21
    $region20: #{tpu_custom_call.1} parent=1 // pred_region
      _
    $region21: #{tpu_custom_call.1} parent=1 // pred_fallthru
      _
    // Predicated region
    $region22: #{tpu_custom_call.1} parent=1 // pred_check
      _
    $region23: #{tpu_custom_call.1} parent=1 // pred_check_branch
      %59 = sbr.rel (0) target = $region25
    $region24: #{tpu_custom_call.1} parent=1 // pred_region
      %61 = vsyncadd [#allocation9], 0
      %s62 = sshll.u32 %s5, 4
      %s63 = int_to_ptr.hbm [resolvable:$true] %s62
      %s64 = sshll.u32 [#allocation8], 4
      %s65 = int_to_ptr.vmem [resolvable:$true] %s64
      %70 = dma.hbm_to_vmem [thread:$0]  %s63, 1024, %s65, [#allocation9], 64, 64, 4
    $region25: #{tpu_custom_call.1} parent=1 // pred_fallthru
      _
    // Predicated region
    $region26: #{tpu_custom_call.1} parent=1 // pred_check
      _
    $region27: #{tpu_custom_call.1} parent=1 // pred_check_branch
      %72 = sbr.rel (0) target = $region29
    $region28: #{tpu_custom_call.1} parent=1 // pred_region
      %74 = dma.done [#allocation3], 128
    $region29: #{tpu_custom_call.1} parent=1 // pred_fallthru
      _
    // Predicated region
    $region30: #{tpu_custom_call.1} parent=1 // pred_check
      _
    $region31: #{tpu_custom_call.1} parent=1 // pred_check_branch
      %76 = sbr.rel (0) target = $region33
    $region32: #{tpu_custom_call.1} parent=1 // pred_region
      %78 = dma.done [#allocation6], 1024
    $region33: #{tpu_custom_call.1} parent=1 // pred_fallthru
      _
    // Predicated region
    $region34: #{tpu_custom_call.1} parent=1 // pred_check
      _
    $region35: #{tpu_custom_call.1} parent=1 // pred_check_branch
      %80 = sbr.rel (0) target = $region37
    $region36: #{tpu_custom_call.1} parent=1 // pred_region
      %82 = dma.done [#allocation6], 1024
    $region37: #{tpu_custom_call.1} parent=1 // pred_fallthru
      _
    // Predicated region
    $region38: #{tpu_custom_call.1} parent=1 // pred_check
      _
    $region39: #{tpu_custom_call.1} parent=1 // pred_check_branch
      %84 = sbr.rel (0) target = $region41
    $region40: #{tpu_custom_call.1} parent=1 // pred_region
      %86 = dma.done [#allocation9], 1024
    $region41: #{tpu_custom_call.1} parent=1 // pred_fallthru
      _
    %v87 = vld [vmem:[#allocation2] sm:$0xf]
    %v88 = vld [vmem:[#allocation2 + $0x4] sm:$0xf]
    %v89 = vunpack.c.l.bf16 %v87
    %v90 = vunpack.c.l.bf16 %v88
    %v91 = vmax.f32 %v89, 0.0
    %v92 = vmax.f32 %v90, 0.0
    %v93 = vpack.c.bf16 %v92, %v91
    %v94 = vld [vmem:[#allocation5] sm:$0xf]
    %v95 = vld [vmem:[#allocation5 + $0x4] sm:$0xf]
    %v96 = vld [vmem:[#allocation5 + $0x8] sm:$0xf]
    %v97 = vld [vmem:[#allocation5 + $0xc] sm:$0xf]
    %v98 = vld [vmem:[#allocation5 + $0x10] sm:$0xf]
    %v99 = vld [vmem:[#allocation5 + $0x14] sm:$0xf]
    %v100 = vld [vmem:[#allocation5 + $0x18] sm:$0xf]
    %v101 = vld [vmem:[#allocation5 + $0x1c] sm:$0xf]
    %v102 = vld [vmem:[#allocation5 + $0x20] sm:$0xf]
    %v103 = vld [vmem:[#allocation5 + $0x24] sm:$0xf]
    %v104 = vld [vmem:[#allocation5 + $0x28] sm:$0xf]
    %v105 = vld [vmem:[#allocation5 + $0x2c] sm:$0xf]
    %v106 = vld [vmem:[#allocation5 + $0x30] sm:$0xf]
    %v107 = vld [vmem:[#allocation5 + $0x34] sm:$0xf]
    %v108 = vld [vmem:[#allocation5 + $0x38] sm:$0xf]
    %v109 = vld [vmem:[#allocation5 + $0x3c] sm:$0xf]
    %v110 = vld [vmem:[%s2] sm:$0x1]
    %v112 = vperm.slane %v110, 0
    %v130 = vunpack.c.l.b16 %v94
    %v131 = vunpack.c.l.b16 %v95
    %v132 = vunpack.c.l.b16 %v96
    %v133 = vunpack.c.l.b16 %v97
    %v134 = vunpack.c.l.b16 %v98
    %v135 = vunpack.c.l.b16 %v99
    %v136 = vunpack.c.l.b16 %v100
    %v137 = vunpack.c.l.b16 %v101
    %v138 = vunpack.c.l.b16 %v102
    %v139 = vunpack.c.l.b16 %v103
    %v140 = vunpack.c.l.b16 %v104
    %v141 = vunpack.c.l.b16 %v105
    %v142 = vunpack.c.l.b16 %v106
    %v143 = vunpack.c.l.b16 %v107
    %v144 = vunpack.c.l.b16 %v108
    %v145 = vunpack.c.l.b16 %v109
    %v146 = vpack.c.b16 %v131, %v130
    %v147 = vpack.c.b16 %v133, %v132
    %v148 = vpack.c.b16 %v135, %v134
    %v149 = vpack.c.b16 %v137, %v136
    %v150 = vpack.c.b16 %v139, %v138
    %v151 = vpack.c.b16 %v141, %v140
    %v152 = vpack.c.b16 %v143, %v142
    %v153 = vpack.c.b16 %v145, %v144
    %162 = vmatpush.bf16.msra.mxu0 %v153
    %163 = vmatpush.bf16.msra.mxu0 %v152
    %164 = vmatpush.bf16.msra.mxu0 %v151
    %165 = vmatpush.bf16.msra.mxu0 %v150
    %166 = vmatpush.bf16.msra.mxu0 %v149
    %167 = vmatpush.bf16.msra.mxu0 %v148
    %168 = vmatpush.bf16.msra.mxu0 %v147
    %169 = vmatpush.bf16.msra.mxu0 %v146
    %170 = vmatmul.bf16.gmra.mxu0 %v93
    %v171 = vpop.f32.mrf.mxu0
    %v172 = vadd.f32 %v112, %v171
    %v173 = vpop.f32.mrf.mxu0
    %v174 = vadd.f32 %v112, %v173
    %175 = vdwg.mxu0
    %v176 = vmax.f32 %v172, 0.0
    %v177 = vmax.f32 %v174, 0.0
    %v178 = vpack.c.bf16 %v177, %v176
    %v179 = vld [vmem:[#allocation7] sm:$0xf]
    %v180 = vld [vmem:[#allocation7 + $0x4] sm:$0xf]
    %v181 = vld [vmem:[#allocation7 + $0x8] sm:$0xf]
    %v182 = vld [vmem:[#allocation7 + $0xc] sm:$0xf]
    %v183 = vld [vmem:[#allocation7 + $0x10] sm:$0xf]
    %v184 = vld [vmem:[#allocation7 + $0x14] sm:$0xf]
    %v185 = vld [vmem:[#allocation7 + $0x18] sm:$0xf]
    %v186 = vld [vmem:[#allocation7 + $0x1c] sm:$0xf]
    %v187 = vld [vmem:[#allocation7 + $0x20] sm:$0xf]
    %v188 = vld [vmem:[#allocation7 + $0x24] sm:$0xf]
    %v189 = vld [vmem:[#allocation7 + $0x28] sm:$0xf]
    %v190 = vld [vmem:[#allocation7 + $0x2c] sm:$0xf]
    %v191 = vld [vmem:[#allocation7 + $0x30] sm:$0xf]
    %v192 = vld [vmem:[#allocation7 + $0x34] sm:$0xf]
    %v193 = vld [vmem:[#allocation7 + $0x38] sm:$0xf]
    %v194 = vld [vmem:[#allocation7 + $0x3c] sm:$0xf]
    %v195 = vld [vmem:[#allocation8] sm:$0xf]
    %v196 = vld [vmem:[#allocation8 + $0x4] sm:$0xf]
    %v197 = vld [vmem:[#allocation8 + $0x8] sm:$0xf]
    %v198 = vld [vmem:[#allocation8 + $0xc] sm:$0xf]
    %v199 = vld [vmem:[#allocation8 + $0x10] sm:$0xf]
    %v200 = vld [vmem:[#allocation8 + $0x14] sm:$0xf]
    %v201 = vld [vmem:[#allocation8 + $0x18] sm:$0xf]
    %v202 = vld [vmem:[#allocation8 + $0x1c] sm:$0xf]
    %v203 = vld [vmem:[#allocation8 + $0x20] sm:$0xf]
    %v204 = vld [vmem:[#allocation8 + $0x24] sm:$0xf]
    %v205 = vld [vmem:[#allocation8 + $0x28] sm:$0xf]
    %v206 = vld [vmem:[#allocation8 + $0x2c] sm:$0xf]
    %v207 = vld [vmem:[#allocation8 + $0x30] sm:$0xf]
    %v208 = vld [vmem:[#allocation8 + $0x34] sm:$0xf]
    %v209 = vld [vmem:[#allocation8 + $0x38] sm:$0xf]
    %v210 = vld [vmem:[#allocation8 + $0x3c] sm:$0xf]
    %v213 = vunpack.c.l.b16 %v87
    %v214 = vunpack.c.l.b16 %v88
    %v215 = vpack.c.b16 %v214, %v213
    %v233 = vunpack.c.l.b16 %v195
    %v234 = vunpack.c.l.b16 %v196
    %v235 = vunpack.c.l.b16 %v197
    %v236 = vunpack.c.l.b16 %v198
    %v237 = vunpack.c.l.b16 %v199
    %v238 = vunpack.c.l.b16 %v200
    %v239 = vunpack.c.l.b16 %v201
    %v240 = vunpack.c.l.b16 %v202
    %v241 = vunpack.c.l.b16 %v203
    %v242 = vunpack.c.l.b16 %v204
    %v243 = vunpack.c.l.b16 %v205
    %v244 = vunpack.c.l.b16 %v206
    %v245 = vunpack.c.l.b16 %v207
    %v246 = vunpack.c.l.b16 %v208
    %v247 = vunpack.c.l.b16 %v209
    %v248 = vunpack.c.l.b16 %v210
    %v249 = vpack.c.b16 %v234, %v233
    %v250 = vpack.c.b16 %v236, %v235
    %v251 = vpack.c.b16 %v238, %v237
    %v252 = vpack.c.b16 %v240, %v239
    %v253 = vpack.c.b16 %v242, %v241
    %v254 = vpack.c.b16 %v244, %v243
    %v255 = vpack.c.b16 %v246, %v245
    %v256 = vpack.c.b16 %v248, %v247
    %265 = vmatpush.bf16.msra.mxu0 %v256
    %266 = vmatpush.bf16.msra.mxu0 %v255
    %267 = vmatpush.bf16.msra.mxu0 %v254
    %268 = vmatpush.bf16.msra.mxu0 %v253
    %269 = vmatpush.bf16.msra.mxu0 %v252
    %270 = vmatpush.bf16.msra.mxu0 %v251
    %271 = vmatpush.bf16.msra.mxu0 %v250
    %272 = vmatpush.bf16.msra.mxu0 %v249
    %273 = vmatmul.bf16.gmra.mxu0 %v215
    %v274 = vpop.f32.mrf.mxu0
    %v275 = vadd.f32 0.0, %v274
    %v276 = vpop.f32.mrf.mxu0
    %v277 = vadd.f32 0.0, %v276
    %278 = vdwg.mxu0
    %v295 = vunpack.c.l.b16 %v179
    %v296 = vunpack.c.l.b16 %v180
    %v297 = vunpack.c.l.b16 %v181
    %v298 = vunpack.c.l.b16 %v182
    %v299 = vunpack.c.l.b16 %v183
    %v300 = vunpack.c.l.b16 %v184
    %v301 = vunpack.c.l.b16 %v185
    %v302 = vunpack.c.l.b16 %v186
    %v303 = vunpack.c.l.b16 %v187
    %v304 = vunpack.c.l.b16 %v188
    %v305 = vunpack.c.l.b16 %v189
    %v306 = vunpack.c.l.b16 %v190
    %v307 = vunpack.c.l.b16 %v191
    %v308 = vunpack.c.l.b16 %v192
    %v309 = vunpack.c.l.b16 %v193
    %v310 = vunpack.c.l.b16 %v194
    %v311 = vpack.c.b16 %v296, %v295
    %v312 = vpack.c.b16 %v298, %v297
    %v313 = vpack.c.b16 %v300, %v299
    %v314 = vpack.c.b16 %v302, %v301
    %v315 = vpack.c.b16 %v304, %v303
    %v316 = vpack.c.b16 %v306, %v305
    %v317 = vpack.c.b16 %v308, %v307
    %v318 = vpack.c.b16 %v310, %v309
    %327 = vmatpush.bf16.msra.mxu0 %v318
    %328 = vmatpush.bf16.msra.mxu0 %v317
    %329 = vmatpush.bf16.msra.mxu0 %v316
    %330 = vmatpush.bf16.msra.mxu0 %v315
    %331 = vmatpush.bf16.msra.mxu0 %v314
    %332 = vmatpush.bf16.msra.mxu0 %v313
    %333 = vmatpush.bf16.msra.mxu0 %v312
    %334 = vmatpush.bf16.msra.mxu0 %v311
    %335 = vmatmul.bf16.gmra.mxu0 %v178
    %v336 = vpop.f32.mrf.mxu0
    %v337 = vadd.f32 %v275, %v336
    %v338 = vpop.f32.mrf.mxu0
    %v339 = vadd.f32 %v277, %v338
    %340 = vdwg.mxu0
    %v341 = vld [vmem:[%s4] sm:$0x1]
    %v343 = vperm.slane %v341, 0
    %v345 = vadd.f32 %v337, %v343
    %v346 = vadd.f32 %v339, %v343
    %347 = vst [vmem:[#allocation10] sm:$0xff] %v345
    %348 = vst [vmem:[#allocation10 + $0x8] sm:$0xff] %v346
    // Predicated region
    $region42: #{tpu_custom_call.1} parent=1 // pred_check
      _
    $region43: #{tpu_custom_call.1} parent=1 // pred_check_branch
      %350 = sbr.rel (0) target = $region45
    $region44: #{tpu_custom_call.1} parent=1 // pred_region
      %352 = vsyncadd [#allocation4], 0
      %s353 = sshll.u32 [#allocation10], 4
      %s354 = int_to_ptr.vmem [resolvable:$true] %s353
      %s355 = sshll.u32 %s6, 4
      %s356 = int_to_ptr.hbm [resolvable:$true] %s355
      %361 = dma.vmem_to_hbm [thread:$0]  %s354, 256, %s356, [#allocation4], 128, 128, 8
    $region45: #{tpu_custom_call.1} parent=1 // pred_fallthru
      _
    // Predicated region
    $region46: #{tpu_custom_call.1} parent=1 // pred_check
      _
    $region47: #{tpu_custom_call.1} parent=1 // pred_check_branch
      %363 = sbr.rel (0) target = $region49
    $region48: #{tpu_custom_call.1} parent=1 // pred_region
      %365 = dma.done [#allocation4], 256
    $region49: #{tpu_custom_call.1} parent=1 // pred_fallthru
      _
    %366 = vsyncpa [#allocation3], 1
    %367 = vsyncpa [#allocation6], 1
    %368 = vsyncpa [#allocation9], 1
    %369 = vsyncpa [#allocation4], 1

</llo_original>
